<compile_context>
chip_gen: v5e
topology: v5e:2x2
jax: 0.10.0
libtpu: 0.0.40
codegen_flags: <defaults>
</compile_context>

<pallas_src>
import functools

import jax
import jax.numpy as jnp
from jax.experimental import pallas as pl
from jax.experimental.pallas import tpu as pltpu


def _round_up(x, m):
    return (x + m - 1) // m * m


def _cdiv(a, b):
    return -(-a // b)


def _vmem_capacity_bytes():
    try:
        return int(pltpu.get_tpu_info().vmem_capacity_bytes)
    except Exception:
        return 64 * 1024 * 1024            # conservative fallback (v7x per-TC size)


_VMEM_CAP = _vmem_capacity_bytes()


# ------------------------------- kernels -------------------------------------

def _kernel_single_k(x_ref, w_ref, bias_ref, o_ref):
    # x_ref:    (C_in, t_hw)   pixels on lanes
    # w_ref:    (t_co, C_in)   BN-scale-folded 1x1 conv weight (resident)
    # bias_ref: (t_co, 1)      folded BN bias = beta - mean * scale
    # o_ref:    (t_co, t_hw)
    x = x_ref[...]
    w = w_ref[...]
    if x.dtype != w.dtype:                 # in-kernel bf16 cast: MXU-rate win, zero extra HBM traffic
        x = x.astype(w.dtype)
    acc = jnp.dot(w, x, preferred_element_type=jnp.float32)
    o_ref[...] = jnp.maximum(acc + bias_ref[...], 0.0).astype(o_ref.dtype)


def _kernel_multi_k_f32(x_ref, w_ref, bias_ref, o_ref):
    # f32 output: accumulate directly into the resident output block (no scratch).
    k = pl.program_id(3)

    @pl.when(k == 0)
    def _():
        o_ref[...] = jnp.zeros_like(o_ref)

    x = x_ref[...]
    w = w_ref[...]
    if x.dtype != w.dtype:
        x = x.astype(w.dtype)
    o_ref[...] += jnp.dot(w, x, preferred_element_type=jnp.float32)

    @pl.when(k == pl.num_programs(3) - 1)
    def _():
        o_ref[...] = jnp.maximum(o_ref[...] + bias_ref[...], 0.0)


def _kernel_multi_k_acc(x_ref, w_ref, bias_ref, o_ref, acc_ref):
    # non-f32 output: keep an f32 scratch accumulator, cast in the epilogue.
    k = pl.program_id(3)

    @pl.when(k == 0)
    def _():
        acc_ref[...] = jnp.zeros_like(acc_ref)

    x = x_ref[...]
    w = w_ref[...]
    if x.dtype != w.dtype:
        x = x.astype(w.dtype)
    acc_ref[...] += jnp.dot(w, x, preferred_element_type=jnp.float32)

    @pl.when(k == pl.num_programs(3) - 1)
    def _():
        o_ref[...] = jnp.maximum(acc_ref[...] + bias_ref[...], 0.0).astype(o_ref.dtype)


# ------------------------------- wrapper --------------------------------------

@functools.partial(jax.jit, static_argnames=("mxu_dtype",))
def conv_module_forward(x_nchw, weight, gamma, beta, run_mean, run_var, *,
                        mxu_dtype=None):
    """Forward of ConvModule with k=1, s=1, p=0, g=1, act=ReLU (BN in eval mode).

    x_nchw: (N, C_in, H, W)
    weight: (C_out, C_in, 1, 1)  (PyTorch conv weight layout)
    gamma, beta, run_mean, run_var: (C_out,)
    mxu_dtype: None -> matmul in x's dtype (exact f32 path);
               jnp.bfloat16 -> x tile cast to bf16 *inside* the kernel (f32 accum).
    returns: (N, C_out, H, W) in x_nchw.dtype
    """
    eps = 1e-3
    N, C_in, H, W = x_nchw.shape
    C_out = weight.shape[0]
    out_dtype = jnp.dtype(x_nchw.dtype)
    HW = H * W

    # ---- fold BN (inference semantics); fold the scale into the conv weight -----
    scale = gamma * jax.lax.rsqrt(run_var + eps)             # (C_out,)
    bias = (beta - run_mean * scale).astype(jnp.float32)     # (C_out,)
    w_cdtype = jnp.dtype(mxu_dtype) if mxu_dtype is not None else out_dtype
    w = (weight[:, :, 0, 0] * scale[:, None]).astype(w_cdtype)   # (C_out, C_in)

    x_bytes = jnp.dtype(x_nchw.dtype).itemsize
    w_bytes = w_cdtype.itemsize
    o_bytes = out_dtype.itemsize

    # ---- C_in (K) tiling: single step whenever the weight is only a few MiB -----
    MAX_T_CI = 2048
    if C_in <= MAX_T_CI:
        ci_tiles, t_ci = 1, C_in
    else:
        ci_tiles = _cdiv(C_in, MAX_T_CI)
        t_ci = _round_up(_cdiv(C_in, ci_tiles), 128)
    ci_pad = ci_tiles * t_ci

    # ---- C_out tiling ------------------------------------------------------------
    MAX_T_CO = 512
    if C_out <= MAX_T_CO:
        co_tiles, t_co = 1, C_out
    else:
        co_tiles = _cdiv(C_out, MAX_T_CO)
        t_co = _round_up(_cdiv(C_out, co_tiles), 8)
    co_pad = co_tiles * t_co

    multi_k = ci_tiles > 1
    use_acc = multi_k and out_dtype != jnp.dtype(jnp.float32)

    # ---- HW (lane) tiling, sized from the chip's actual VMEM capacity -----------
    tile_budget = min(int(0.60 * _VMEM_CAP), 80 * 1024 * 1024)
    default_max_t_hw = 4096 if _VMEM_CAP > 96 * 1024 * 1024 else 2048

    per_col = 2 * t_ci * x_bytes + 2 * t_co * o_bytes + (t_co * 4 if use_acc else 0)
    fixed = 2 * t_co * t_ci * w_bytes + 2 * t_co * 128 * 4   # weight + lane-padded bias (double-buffered)
    afford = max(tile_budget - fixed, per_col * 128)
    max_t_hw = min(default_max_t_hw, max(128, afford // per_col // 128 * 128))

    if HW < 128:
        hw_tiles, t_hw = 1, HW               # full-extent lane block; no padding at all
    else:
        hw_eff = _round_up(HW, 128)
        hw_tiles = _cdiv(hw_eff, max_t_hw)
        if N * co_tiles * hw_tiles == 1 and hw_eff >= 256:
            hw_tiles = 2                     # keep both v7x TensorCores busy
        t_hw = _round_up(_cdiv(hw_eff, hw_tiles), 128)

    # ---- operands: NCHW-native, no transposes, no spatial padding ----------------
    x = x_nchw.reshape(N, C_in, HW)          # contiguous collapse (metadata only)
    if ci_pad != C_in:                       # rare (C_in > 2048): K padding must be zeros
        x = jnp.pad(x, ((0, 0), (0, ci_pad - C_in), (0, 0)))
    if ci_pad != C_in or co_pad != C_out:
        w = jnp.pad(w, ((0, co_pad - C_out), (0, ci_pad - C_in)))
    bias2 = bias.reshape(C_out, 1)
    if co_pad != C_out:
        bias2 = jnp.pad(bias2, ((0, co_pad - C_out), (0, 0)))

    # ---- grid / specs -------------------------------------------------------------
    if not multi_k:
        grid = (N, hw_tiles, co_tiles)       # co innermost: x tile fetched once per (n,hw)
        in_specs = [
            pl.BlockSpec((None, t_ci, t_hw), lambda n, hw, co: (n, 0, hw)),
            pl.BlockSpec((t_co, t_ci), lambda n, hw, co: (co, 0)),
            pl.BlockSpec((t_co, 1), lambda n, hw, co: (co, 0)),
        ]
        out_spec = pl.BlockSpec((None, t_co, t_hw), lambda n, hw, co: (n, co, hw))
        kernel = _kernel_single_k
        scratch = []
        dim_sem = ("parallel", "parallel", "parallel")
    else:
        grid = (N, hw_tiles, co_tiles, ci_tiles)   # reduction axis last
        in_specs = [
            pl.BlockSpec((None, t_ci, t_hw), lambda n, hw, co, k: (n, k, hw)),
            pl.BlockSpec((t_co, t_ci), lambda n, hw, co, k: (co, k)),
            pl.BlockSpec((t_co, 1), lambda n, hw, co, k: (co, 0)),
        ]
        out_spec = pl.BlockSpec((None, t_co, t_hw), lambda n, hw, co, k: (n, co, hw))
        if use_acc:
            kernel = _kernel_multi_k_acc
            scratch = [pltpu.VMEM((t_co, t_hw), jnp.float32)]
        else:
            kernel = _kernel_multi_k_f32
            scratch = []
        dim_sem = ("parallel", "parallel", "parallel", "arbitrary")

    # ---- VMEM limit (with headroom) and cost estimate -----------------------------
    vmem_need = fixed + per_col * max(t_hw, 128)
    vmem_limit = int(min(max(vmem_need + (8 << 20), 32 << 20), int(0.85 * _VMEM_CAP)))
    vmem_limit = max(vmem_limit, int(vmem_need))

    hw_cover = hw_tiles * t_hw
    cost = pl.CostEstimate(
        flops=int(2 * N * co_pad * ci_pad * hw_cover),
        transcendentals=0,
        bytes_accessed=int(N * C_in * HW * x_bytes + co_pad * ci_pad * w_bytes
                           + N * co_pad * HW * o_bytes + co_pad * 4),
    )

    out = pl.pallas_call(
        kernel,
        out_shape=jax.ShapeDtypeStruct((N, co_pad, HW), out_dtype),
        grid_spec=pltpu.PrefetchScalarGridSpec(
            num_scalar_prefetch=0,
            grid=grid,
            in_specs=in_specs,
            out_specs=out_spec,
            scratch_shapes=scratch,
        ),
        compiler_params=pltpu.CompilerParams(
            dimension_semantics=dim_sem,
            vmem_limit_bytes=vmem_limit,
        ),
        cost_estimate=cost,
    )(x, w, bias2)

    if co_pad != C_out:                      # rare; spatial axis needs no slicing at all
        out = out[:, :C_out, :]
    return out.reshape(N, C_out, H, W)       # contiguous expand, no transpose


# ------------------------------- reference & test ------------------------------

def _reference(x_nchw, weight, gamma, beta, run_mean, run_var):
    eps = 1e-3
    y = jnp.einsum("nchw,oc->nohw", x_nchw, weight[:, :, 0, 0])
    scale = gamma * jax.lax.rsqrt(run_var + eps)
    bias = beta - run_mean * scale
    y = y * scale[None, :, None, None] + bias[None, :, None, None]
    return jnp.maximum(y, 0.0)


if __name__ == "__main__":
    key = jax.random.PRNGKey(0)
    k_x, k_w, k_g, k_b, k_m, k_v = jax.random.split(key, 6)

    N, C_in, H, W = 2, 4, 16, 16
    C_out = 8

    x = jax.random.normal(k_x, (N, C_in, H, W), dtype=jnp.float32)
    weight = jax.random.normal(k_w, (C_out, C_in, 1, 1), dtype=jnp.float32) * 0.1
    gamma = 1.0 + 0.1 * jax.random.normal(k_g, (C_out,), dtype=jnp.float32)
    beta = 0.1 * jax.random.normal(k_b, (C_out,), dtype=jnp.float32)
    run_mean = 0.1 * jax.random.normal(k_m, (C_out,), dtype=jnp.float32)
    run_var = jnp.abs(jax.random.normal(k_v, (C_out,), dtype=jnp.float32)) + 0.5

    ref = _reference(x, weight, gamma, beta, run_mean, run_var)

    # Exact path (matmul in f32).
    out_f32 = jax.block_until_ready(
        conv_module_forward(x, weight, gamma, beta, run_mean, run_var))
    assert out_f32.shape == (N, C_out, H, W)
    assert jnp.allclose(out_f32, ref, atol=1e-4, rtol=1e-4)

    # bf16 MXU path: x stays f32 in HBM, cast in-kernel; bf16 weight, f32 accum.
    out_bf16 = jax.block_until_ready(
        conv_module_forward(x, weight, gamma, beta, run_mean, run_var,
                            mxu_dtype=jnp.bfloat16))
    assert out_bf16.shape == (N, C_out, H, W)
    assert jnp.allclose(out_bf16, ref, atol=2e-2, rtol=2e-2)

    # Ragged spatial size (HW=100 < 128: full-extent lane block, still no padding).
    x2 = jax.random.normal(k_x, (N, C_in, 10, 10), dtype=jnp.float32)
    out2 = jax.block_until_ready(
        conv_module_forward(x2, weight, gamma, beta, run_mean, run_var))
    ref2 = _reference(x2, weight, gamma, beta, run_mean, run_var)
    assert out2.shape == (N, C_out, 10, 10)
    assert jnp.allclose(out2, ref2, atol=1e-4, rtol=1e-4)

    print("KERNEL_OK")
</pallas_src>

<mosaic_0001>
module attributes {stable_mosaic.version = 11 : i64} {
  func.func @_kernel_single_k(%arg0: i32, %arg1: i32, %arg2: i32, %arg3: memref<1x4x256xf32, #tpu.memory_space<vmem>>, %arg4: memref<8x4xf32, #tpu.memory_space<vmem>>, %arg5: memref<8x1xf32, #tpu.memory_space<vmem>>, %arg6: memref<1x8x256xf32, #tpu.memory_space<vmem>>) attributes {dimension_semantics = [#tpu.dimension_semantics<parallel>, #tpu.dimension_semantics<parallel>, #tpu.dimension_semantics<parallel>], iteration_bounds = array<i64: 2, 1, 1>, scalar_prefetch = 0 : i64, scratch_operands = 0 : i64, tpu.core_type = #tpu.core_type<tc>, window_params = [{transform_indices = @transform_0, window_bounds = array<i64: 1, 4, 256>}, {transform_indices = @transform_1, window_bounds = array<i64: 8, 4>}, {transform_indices = @transform_2, window_bounds = array<i64: 8, 1>}, {transform_indices = @transform_3, window_bounds = array<i64: 1, 8, 256>}]} {
    %c0 = arith.constant 0 : index
    %c0_0 = arith.constant 0 : index
    %c0_1 = arith.constant 0 : index
    %0 = vector.load %arg3[%c0, %c0_0, %c0_1] : memref<1x4x256xf32, #tpu.memory_space<vmem>>, vector<1x4x256xf32>
    %1 = vector.shape_cast %0 : vector<1x4x256xf32> to vector<4x256xf32>
    %c0_2 = arith.constant 0 : index
    %c0_3 = arith.constant 0 : index
    %2 = vector.load %arg4[%c0_2, %c0_3] : memref<8x4xf32, #tpu.memory_space<vmem>>, vector<8x4xf32>
    %cst = arith.constant dense<0.000000e+00> : vector<8x256xf32>
    %3 = tpu.matmul %2, %1, %cst {dimension_numbers = #tpu.dot_dimension_numbers<[1], [0], [0], [1], [0, 0, 1, 1], [], []>} : vector<8x4xf32>, vector<4x256xf32>, vector<8x256xf32> -> vector<8x256xf32>
    %c0_4 = arith.constant 0 : index
    %c0_5 = arith.constant 0 : index
    %4 = vector.load %arg5[%c0_4, %c0_5] : memref<8x1xf32, #tpu.memory_space<vmem>>, vector<8x1xf32>
    %5 = vector.broadcast %4 : vector<8x1xf32> to vector<8x256xf32>
    %6 = arith.addf %3, %5 : vector<8x256xf32>
    %cst_6 = arith.constant 0.000000e+00 : f32
    %7 = vector.broadcast %cst_6 : f32 to vector<8x256xf32>
    %8 = arith.maximumf %6, %7 : vector<8x256xf32>
    %c0_7 = arith.constant 0 : index
    %c0_8 = arith.constant 0 : index
    %c0_9 = arith.constant 0 : index
    %9 = vector.load %arg6[%c0_7, %c0_8, %c0_9] : memref<1x8x256xf32, #tpu.memory_space<vmem>>, vector<1x8x256xf32>
    %10 = vector.shape_cast %9 : vector<1x8x256xf32> to vector<8x256xf32>
    %11 = vector.shape_cast %8 : vector<8x256xf32> to vector<1x8x256xf32>
    tpu.vector_store %arg6[%c0_7, %c0_8, %c0_9], %11 {strides = array<i32>} : memref<1x8x256xf32, #tpu.memory_space<vmem>>, vector<1x8x256xf32>,
    return
  }
  func.func @transform_0(%arg0: i32, %arg1: i32, %arg2: i32) -> (i32, i32, i32) {
    %c0_i32 = arith.constant 0 : i32
    %c0_i32_0 = arith.constant 0 : i32
    return %arg0, %c0_i32, %arg1 : i32, i32, i32
  }
  func.func @transform_1(%arg0: i32, %arg1: i32, %arg2: i32) -> (i32, i32) {
    %c0_i32 = arith.constant 0 : i32
    %c0_i32_0 = arith.constant 0 : i32
    return %arg2, %c0_i32 : i32, i32
  }
  func.func @transform_2(%arg0: i32, %arg1: i32, %arg2: i32) -> (i32, i32) {
    %c0_i32 = arith.constant 0 : i32
    %c0_i32_0 = arith.constant 0 : i32
    return %arg2, %c0_i32 : i32, i32
  }
  func.func @transform_3(%arg0: i32, %arg1: i32, %arg2: i32) -> (i32, i32, i32) {
    %c0_i32 = arith.constant 0 : i32
    return %arg0, %arg2, %arg1 : i32, i32, i32
  }
}

</mosaic_0001>

<llo_original>
// kernel: conv_module_forward.1
$region0: #{conv_module_forward.1}
  #allocation0 [shape = 'u32[]', space=smem, size = 0x4, offset = 0x4, fixed_abs, tag = 'smem constant byte address 0x4 - core index']
  #allocation1 [shape = 'u32[72,128]{1,0:T(1,128)}', space=vmem, size = 0x9000, scoped, tag = 'internal scratch']
  %s0 = inlined_call_operand.vmem [shape: f32[2,4,256], index: 0, kind: input, shape index: {}]
  %s1 = inlined_call_operand.vmem [shape: f32[8,4], index: 1, kind: input, shape index: {}]
  %s2 = inlined_call_operand.vmem [shape: f32[8,1], index: 2, kind: input, shape index: {}]
  %s3 = inlined_call_operand.vmem [shape: f32[2,8,256], index: 3, kind: output, shape index: {}]
  %s4 = sld [smem:[#allocation0]]
  $region45: #{conv_module_forward.1} parent=0
    _
  %s6 = ssub.s32 1, %s4
  %s7 = scalar_select 0, %s6, %s4
  loop: start=0, step=1, limit=4
  $region2: #{conv_module_forward.1} parent=0 // loop_pre_header
    _
  $region3: #{conv_module_forward.1} parent=0 // loop_header
    %s9 = sphi 0, %s13
    %p10 = scmp.ge.s32.totalorder %s9, 4
    %s16 = sphi 0, %s35
    %s17 = sphi 0, %s31
    %s18 = sphi 0, %s27
    %s19 = sphi 0, %s16
    %s20 = sphi 0, %s17
    %s21 = sphi 0, %s18
    %s22 = sphi 0, %s19
    %s23 = sphi 0, %s20
    %s24 = sphi 0, %s21
    %s40 = sphi 0, %s42
    %s43 = sphi 0, %s40
    %s44 = sphi 0, %s43
    %s60 = sphi 0, %s44
    %s66 = sphi 0, %s68
    %s69 = sphi 0, %s66
    %s70 = sphi 0, %s69
    %s86 = sphi 0, %s70
    %s92 = sphi 0, %s94
    %s95 = sphi 0, %s92
    %s96 = sphi 0, %s95
    %s112 = sphi 0, %s96
    %s122 = sphi 0, %s124
    %s125 = sphi 0, %s122
    %s126 = sphi 0, %s125
    %s142 = sphi 0, %s126
  $region4: #{conv_module_forward.1} parent=0 // loop_header_branch
    %12 = sbr.rel (%p10) target = $region8
  $region5: #{conv_module_forward.1} parent=0 // loop_body
    %s14 = ssub.s32 %s9, 1
    %s15 = ssub.s32 %s9, 2
    %s25 = sadd.s32 1, %s18
    %p26 = scmp.ge.s32.totalorder %s25, 1
    %s27 = scalar_select %p26, 0, %s25
    %s28 = sadd.s32 1, %s17
    %s29 = scalar_select %p26, %s28, %s17
    %p30 = scmp.ge.s32.totalorder %s29, 1
    %s31 = scalar_select %p30, 0, %s29
    %s32 = sadd.s32 1, %s16
    %s33 = scalar_select %p30, %s32, %s16
    %p34 = scmp.ge.s32.totalorder %s33, 2
    %s35 = scalar_select %p34, 0, %s33
    %s36 = ssub.s32 %s16, %s35
    %s37 = ssub.s32 %s17, %s31
    %s38 = sor.u32 %s36, %s37
    %p39 = scmp.eq.s32.totalorder %s38, 0
    %s41 = sadd.s32 %s40, 1
    %s42 = scalar_select %p39, %s40, %s41
    %p45 = pneg %p39
    %p46 = scmp.eq.s32.totalorder %s9, 1
    %p47 = por %p45, %p46
    %p48 = scmp.ne.s32.totalorder %s40, %s43
    %p49 = scmp.eq.s32.totalorder %s9, 0
    %p50 = por %p48, %p49
    %p51 = scmp.ne.s32.totalorder %s40, %s43
    %p52 = scmp.eq.s32.totalorder %s14, 1
    %p53 = por %p51, %p52
    %p54 = scmp.ne.s32.totalorder %s43, %s44
    %p55 = scmp.eq.s32.totalorder %s14, 0
    %p56 = por %p54, %p55
    %p57 = scmp.ne.s32.totalorder %s43, %s44
    %p58 = scmp.eq.s32.totalorder %s15, 1
    %p59 = por %p57, %p58
    %p61 = scmp.ne.s32.totalorder %s44, %s60
    %p62 = scmp.eq.s32.totalorder %s15, 0
    %p63 = por %p61, %p62
    %s64 = ssub.s32 %s18, %s27
    %p65 = scmp.eq.s32.totalorder %s64, 0
    %s67 = sadd.s32 %s66, 1
    %s68 = scalar_select %p65, %s66, %s67
    %p71 = pneg %p65
    %p72 = scmp.eq.s32.totalorder %s9, 1
    %p73 = por %p71, %p72
    %p74 = scmp.ne.s32.totalorder %s66, %s69
    %p75 = scmp.eq.s32.totalorder %s9, 0
    %p76 = por %p74, %p75
    %p77 = scmp.ne.s32.totalorder %s66, %s69
    %p78 = scmp.eq.s32.totalorder %s14, 1
    %p79 = por %p77, %p78
    %p80 = scmp.ne.s32.totalorder %s69, %s70
    %p81 = scmp.eq.s32.totalorder %s14, 0
    %p82 = por %p80, %p81
    %p83 = scmp.ne.s32.totalorder %s69, %s70
    %p84 = scmp.eq.s32.totalorder %s15, 1
    %p85 = por %p83, %p84
    %p87 = scmp.ne.s32.totalorder %s70, %s86
    %p88 = scmp.eq.s32.totalorder %s15, 0
    %p89 = por %p87, %p88
    %s90 = ssub.s32 %s18, %s27
    %p91 = scmp.eq.s32.totalorder %s90, 0
    %s93 = sadd.s32 %s92, 1
    %s94 = scalar_select %p91, %s92, %s93
    %p97 = pneg %p91
    %p98 = scmp.eq.s32.totalorder %s9, 1
    %p99 = por %p97, %p98
    %p100 = scmp.ne.s32.totalorder %s92, %s95
    %p101 = scmp.eq.s32.totalorder %s9, 0
    %p102 = por %p100, %p101
    %p103 = scmp.ne.s32.totalorder %s92, %s95
    %p104 = scmp.eq.s32.totalorder %s14, 1
    %p105 = por %p103, %p104
    %p106 = scmp.ne.s32.totalorder %s95, %s96
    %p107 = scmp.eq.s32.totalorder %s14, 0
    %p108 = por %p106, %p107
    %p109 = scmp.ne.s32.totalorder %s95, %s96
    %p110 = scmp.eq.s32.totalorder %s15, 1
    %p111 = por %p109, %p110
    %p113 = scmp.ne.s32.totalorder %s96, %s112
    %p114 = scmp.eq.s32.totalorder %s15, 0
    %p115 = por %p113, %p114
    %s116 = ssub.s32 %s16, %s35
    %s117 = ssub.s32 %s18, %s27
    %s118 = sor.u32 %s116, %s117
    %s119 = ssub.s32 %s17, %s31
    %s120 = sor.u32 %s118, %s119
    %p121 = scmp.eq.s32.totalorder %s120, 0
    %s123 = sadd.s32 %s122, 1
    %s124 = scalar_select %p121, %s122, %s123
    %p127 = pneg %p121
    %p128 = scmp.eq.s32.totalorder %s9, 1
    %p129 = por %p127, %p128
    %p130 = scmp.ne.s32.totalorder %s122, %s125
    %p131 = scmp.eq.s32.totalorder %s9, 0
    %p132 = por %p130, %p131
    %p133 = scmp.ne.s32.totalorder %s122, %s125
    %p134 = scmp.eq.s32.totalorder %s14, 1
    %p135 = por %p133, %p134
    %p136 = scmp.ne.s32.totalorder %s125, %s126
    %p137 = scmp.eq.s32.totalorder %s14, 0
    %p138 = por %p136, %p137
    %p139 = scmp.ne.s32.totalorder %s125, %s126
    %p140 = scmp.eq.s32.totalorder %s15, 1
    %p141 = por %p139, %p140
    %p143 = scmp.ne.s32.totalorder %s126, %s142
    %p144 = scmp.eq.s32.totalorder %s15, 0
    %p145 = por %p143, %p144
    %p146 = scmp.le.s32.totalorder 1, %s9
    %p147 = scmp.lt.s32.totalorder %s9, 3
    %p148 = pnand %p146, %p147
    %p149 = pneg %p148
    // Predicated region
    $region9: #{conv_module_forward.1} parent=5 // pred_check
      _
    $region10: #{conv_module_forward.1} parent=5 // pred_check_branch
      %151 = sbr.rel (%p148) target = $region12
    $region11: #{conv_module_forward.1} parent=5 // pred_region
      %s152 = ssub.s32 %s9, 1
      // Predicated region
      $region13: #{conv_module_forward.1} parent=11 // pred_check
        %p153 = pneg %p82
      $region14: #{conv_module_forward.1} parent=11 // pred_check_branch
        %155 = sbr.rel (%p153) target = $region16
      $region15: #{conv_module_forward.1} parent=11 // pred_region
        %p156 = scmp.lt.s32.totalorder %s21, 0
        %s157 = scalar_select %p156, %s21, 0
        %s158 = smul.addr %s157, 8
        %s159 = scalar_lea.vmem %s1, %s158
      $region16: #{conv_module_forward.1} parent=11 // pred_fallthru
        _
      // Predicated region
      $region17: #{conv_module_forward.1} parent=11 // pred_check
        %p160 = pneg %p108
      $region18: #{conv_module_forward.1} parent=11 // pred_check_branch
        %162 = sbr.rel (%p160) target = $region20
      $region19: #{conv_module_forward.1} parent=11 // pred_region
        %p163 = scmp.lt.s32.totalorder %s21, 0
        %s164 = scalar_select %p163, %s21, 0
        %s165 = smul.addr %s164, 8
        %s166 = scalar_lea.vmem %s2, %s165
      $region20: #{conv_module_forward.1} parent=11 // pred_fallthru
        _
    $region12: #{conv_module_forward.1} parent=5 // pred_fallthru
      _
    %p167 = scmp.lt.s32.totalorder %s9, 2
    // Predicated region
    $region21: #{conv_module_forward.1} parent=5 // pred_check
      %p168 = pneg %p167
    $region22: #{conv_module_forward.1} parent=5 // pred_check_branch
      %170 = sbr.rel (%p168) target = $region24
    $region23: #{conv_module_forward.1} parent=5 // pred_region
      // Predicated region
      $region25: #{conv_module_forward.1} parent=23 // pred_check
        %p171 = pneg %p50
      $region26: #{conv_module_forward.1} parent=23 // pred_check_branch
        %173 = sbr.rel (%p171) target = $region28
      $region27: #{conv_module_forward.1} parent=23 // pred_region
        %s174 = smul.u32 2, %s17
        %p175 = scmp.lt.s32.totalorder %s16, 1
        %s176 = scalar_select %p175, %s16, 1
        %p177 = scmp.lt.s32.totalorder %s174, 1
        %s178 = scalar_select %p177, %s174, 1
        %s179 = smul.addr %s176, 2
        %s180 = sadd.s32 %s178, %s179
        %s181 = smul.addr %s180, 4
        %s182 = scalar_lea.vmem %s0, %s181
        %s183 = smul.u32 2, %s17
      $region28: #{conv_module_forward.1} parent=23 // pred_fallthru
        _
    $region24: #{conv_module_forward.1} parent=5 // pred_fallthru
      _
    %p184 = scmp.le.s32.totalorder 1, %s9
    %p185 = scmp.lt.s32.totalorder %s9, 3
    %p186 = pnand %p184, %p185
    %p187 = pneg %p186
    // Predicated region
    $region29: #{conv_module_forward.1} parent=5 // pred_check
      _
    $region30: #{conv_module_forward.1} parent=5 // pred_check_branch
      %189 = sbr.rel (%p186) target = $region32
    $region31: #{conv_module_forward.1} parent=5 // pred_region
      %s190 = ssub.s32 %s9, 1
      %s191 = smul.u32 2, %s20
      %p192 = scmp.lt.s32.totalorder %s19, 1
      %s193 = scalar_select %p192, %s19, 1
      %p194 = scmp.lt.s32.totalorder %s191, 1
      %s195 = scalar_select %p194, %s191, 1
      %s196 = smul.addr %s193, 2
      %s197 = sadd.s32 %s195, %s196
      %s198 = smul.addr %s197, 4
      %s199 = scalar_lea.vmem %s0, %s198
      %p200 = pneg %p56
      %p201 = pneg %p53
      %p202 = scmp.lt.s32.totalorder %s21, 0
      %s203 = scalar_select %p202, %s21, 0
      %s204 = smul.addr %s203, 8
      %s205 = scalar_lea.vmem %s1, %s204
      %p206 = pneg %p82
      %p207 = pneg %p79
      %p208 = scmp.lt.s32.totalorder %s21, 0
      %s209 = scalar_select %p208, %s21, 0
      %s210 = smul.addr %s209, 8
      %s211 = scalar_lea.vmem %s2, %s210
      %p212 = pneg %p108
      %p213 = pneg %p105
      %p214 = pneg %p138
      %p215 = pneg %p135
      %s216 = smul.u32 2, %s20
      %p217 = scmp.lt.s32.totalorder %s19, 1
      %s218 = scalar_select %p217, %s19, 1
      %p219 = scmp.lt.s32.totalorder %s21, 0
      %s220 = scalar_select %p219, %s21, 0
      %p221 = scmp.lt.s32.totalorder %s216, 1
      %s222 = scalar_select %p221, %s216, 1
      %s223 = smul.addr %s220, 2
      %s224 = sadd.s32 %s222, %s223
      %s225 = smul.addr %s218, 2
      %s226 = sadd.s32 %s224, %s225
      %s227 = smul.addr %s226, 8
      %s228 = scalar_lea.vmem %s3, %s227
      %s229 = smul.u32 2, %s20
      %p230 = scmp.lt.s32.totalorder %s19, 1
      %s231 = scalar_select %p230, %s19, 1
      %p232 = scmp.lt.s32.totalorder %s229, 1
      %s233 = scalar_select %p232, %s229, 1
      %s234 = smul.addr %s231, 2
      %s235 = sadd.s32 %s233, %s234
      %s236 = smul.addr %s235, 4
      %s237 = scalar_lea.vmem %s0, %s236
      %s238 = smul.u32 2, %s20
      %p239 = scmp.lt.s32.totalorder %s21, 0
      %s240 = scalar_select %p239, %s21, 0
      %s241 = smul.addr %s240, 8
      %s242 = scalar_lea.vmem %s1, %s241
      %p243 = scmp.lt.s32.totalorder %s21, 0
      %s244 = scalar_select %p243, %s21, 0
      %s245 = smul.addr %s244, 8
      %s246 = scalar_lea.vmem %s2, %s245
      %s247 = smul.u32 2, %s20
      %p248 = scmp.lt.s32.totalorder %s19, 1
      %s249 = scalar_select %p248, %s19, 1
      %p250 = scmp.lt.s32.totalorder %s21, 0
      %s251 = scalar_select %p250, %s21, 0
      %p252 = scmp.lt.s32.totalorder %s247, 1
      %s253 = scalar_select %p252, %s247, 1
      %s254 = smul.addr %s251, 2
      %s255 = sadd.s32 %s253, %s254
      %s256 = smul.addr %s249, 2
      %s257 = sadd.s32 %s255, %s256
      %s258 = smul.addr %s257, 8
      %s259 = scalar_lea.vmem %s3, %s258
      %s260 = smul.u32 2, %s20
      %v261 = vld [vmem:[%s237] sm:$0xff]
      %v262 = vld [vmem:[%s242] sm:$0xff]
      %v263 = vld [vmem:[%s246] sm:$0xff]
      %265 = vset.pattern.permute.xlu0 0
      %266 = vperm.xlu0 %265, %v263
      %v267 = vpop.permute.xlu0 %266
      %270 = vst [vmem:[#allocation1] ss:$2 sm:$0xff] %v261
      %v271 = vld.sshfl [vmem:[#allocation1] sm:$0xff pattern:$0x75316420]
      %v272 = vld.sshfl [vmem:[#allocation1 + $0x8] sm:$0xff pattern:$0x75316420]
      %vm273 = vcmask 31744
      %v275 = vsel %vm273, %v262, 0
      %vm277 = vcmask 1043456
      %v278 = vsel %vm277, %v271, 0
      %v280 = vsel %vm277, %v272, 0
      %282 = vmatpush.msra.mxu0 0.0
      %283 = vmatpush.msra.mxu0 0.0
      %284 = vmatpush.msra.mxu0 0.0
      %285 = vmatpush.msra.mxu0 0.0
      %286 = vmatpush.msra.mxu0 0.0
      %287 = vmatpush.msra.mxu0 0.0
      %288 = vmatpush.msra.mxu0 0.0
      %289 = vmatpush.msra.mxu0 0.0
      %290 = vmatpush.msra.mxu0 0.0
      %291 = vmatpush.msra.mxu0 0.0
      %292 = vmatpush.msra.mxu0 0.0
      %293 = vmatpush.msra.mxu0 0.0
      %294 = vmatpush.msra.mxu0 0.0
      %295 = vmatpush.msra.mxu0 0.0
      %296 = vmatpush.msra.mxu0 0.0
      %297 = vmatpush.msra.mxu0 %v278
      %298 = vmatmul.f32.gmra.mxu0 %v275
      %v299 = vpop.f32.mrf.mxu0
      %v300 = vadd.f32 %v267, %v299
      %301 = vdwg.mxu0
      %302 = vmatpush.msra.mxu0 0.0
      %303 = vmatpush.msra.mxu0 0.0
      %304 = vmatpush.msra.mxu0 0.0
      %305 = vmatpush.msra.mxu0 0.0
      %306 = vmatpush.msra.mxu0 0.0
      %307 = vmatpush.msra.mxu0 0.0
      %308 = vmatpush.msra.mxu0 0.0
      %309 = vmatpush.msra.mxu0 0.0
      %310 = vmatpush.msra.mxu0 0.0
      %311 = vmatpush.msra.mxu0 0.0
      %312 = vmatpush.msra.mxu0 0.0
      %313 = vmatpush.msra.mxu0 0.0
      %314 = vmatpush.msra.mxu0 0.0
      %315 = vmatpush.msra.mxu0 0.0
      %316 = vmatpush.msra.mxu0 0.0
      %317 = vmatpush.msra.mxu0 %v280
      %318 = vmatmul.f32.gmra.mxu0 %v275
      %v319 = vpop.f32.mrf.mxu0
      %v320 = vadd.f32 %v267, %v319
      %321 = vdwg.mxu0
      %v322 = vmax.f32 %v300, 0.0
      %v323 = vmax.f32 %v320, 0.0
      %324 = vst [vmem:[%s259] sm:$0xff] %v322
      %325 = vst [vmem:[%s259 + $0x8] sm:$0xff] %v323
      %s326 = smul.u32 2, %s20
      %p327 = scmp.lt.s32.totalorder %s19, 1
      %s328 = scalar_select %p327, %s19, 1
      %p329 = scmp.lt.s32.totalorder %s21, 0
      %s330 = scalar_select %p329, %s21, 0
      %p331 = scmp.lt.s32.totalorder %s326, 1
      %s332 = scalar_select %p331, %s326, 1
      %s333 = smul.addr %s330, 2
      %s334 = sadd.s32 %s332, %s333
      %s335 = smul.addr %s328, 2
      %s336 = sadd.s32 %s334, %s335
      %s337 = smul.addr %s336, 8
      %s338 = scalar_lea.vmem %s3, %s337
      // Predicated region
      $region33: #{conv_module_forward.1} parent=31 // pred_check
        %p339 = pneg %p135
      $region34: #{conv_module_forward.1} parent=31 // pred_check_branch
        %341 = sbr.rel (%p339) target = $region36
      $region35: #{conv_module_forward.1} parent=31 // pred_region
        %s342 = smul.u32 2, %s20
      $region36: #{conv_module_forward.1} parent=31 // pred_fallthru
        _
    $region32: #{conv_module_forward.1} parent=5 // pred_fallthru
      _
    %p343 = scmp.le.s32.totalorder 2, %s9
    // Predicated region
    $region37: #{conv_module_forward.1} parent=5 // pred_check
      %p344 = pneg %p343
    $region38: #{conv_module_forward.1} parent=5 // pred_check_branch
      %346 = sbr.rel (%p344) target = $region40
    $region39: #{conv_module_forward.1} parent=5 // pred_region
      %s347 = ssub.s32 %s9, 2
      // Predicated region
      $region41: #{conv_module_forward.1} parent=39 // pred_check
        %p348 = pneg %p141
      $region42: #{conv_module_forward.1} parent=39 // pred_check_branch
        %350 = sbr.rel (%p348) target = $region44
      $region43: #{conv_module_forward.1} parent=39 // pred_region
        %s351 = smul.u32 2, %s23
        %p352 = scmp.lt.s32.totalorder %s22, 1
        %s353 = scalar_select %p352, %s22, 1
        %p354 = scmp.lt.s32.totalorder %s24, 0
        %s355 = scalar_select %p354, %s24, 0
        %p356 = scmp.lt.s32.totalorder %s351, 1
        %s357 = scalar_select %p356, %s351, 1
        %s358 = smul.addr %s355, 2
        %s359 = sadd.s32 %s357, %s358
        %s360 = smul.addr %s353, 2
        %s361 = sadd.s32 %s359, %s360
        %s362 = smul.addr %s361, 8
        %s363 = scalar_lea.vmem %s3, %s362
      $region44: #{conv_module_forward.1} parent=39 // pred_fallthru
        _
    $region40: #{conv_module_forward.1} parent=5 // pred_fallthru
      _
  $region6: #{conv_module_forward.1} parent=0 // loop_footer
    %s13 = sadd.s32 1, %s9
  $region7: #{conv_module_forward.1} parent=0 // loop_footer_branch
    %8 = sbr.rel target = $region3
  $region8: #{conv_module_forward.1} parent=0 // loop_exit
    _

</llo_original>
